<compile_context>
chip_gen: v7x
topology: tpu7x:2x2x1
jax: 0.10.0
libtpu: 0.0.40
codegen_flags: <defaults>
</compile_context>

<pallas_src>
import math
import jax
import jax.numpy as jnp
from jax import lax
from jax.experimental import pallas as pl
from jax.experimental.pallas import tpu as pltpu

# ----------------------------- config (small) -------------------------------
NUM_PROMPTS   = 2     # K: two learned prompts (xavier-init branch)
CONTEXT_LEN   = 16    # L: (CLIP uses 77; small here)
WIDTH         = 32    # W: transformer width
NUM_HEADS     = 4
NUM_LAYERS    = 2
EMBED_DIM     = 32    # D: CLIP joint embedding dim
LENGTH_PROMPT = 6     # number of "X" tokens in the prompt template

BATCH = 2             # tensor.shape[0]
M_PER = 8             # image feature rows per batch element

LANE       = 128      # TPU lane width
MAX_TILE_N = 8192     # (D=32, 8192) f32 tile = 1 MiB/buffer; double-buffered it
                      # fits every generation's scoped-VMEM default (16/32 MiB)


def _round_up(x, m):
    return ((x + m - 1) // m) * m


# =============== Pallas kernel: fused lane-dense similarity hot path =========
def _sim_kernel(txt_ref, imgT_ref, logits_ref, probs_ref):
    # txt_ref:    (K, D)       pre-scaled text features (100 * t / ||t||)
    # imgT_ref:   (D, tile_n)  image features, N on the 128-lane axis
    # logits_ref: (K, tile_n)  unmasked lane-dense stores
    # probs_ref:  (1, tile_n)  softmax(logits)[:, 0] == sigmoid(l0 - l1)
    logits = jnp.dot(txt_ref[...], imgT_ref[...],
                     preferred_element_type=jnp.float32)       # (K, tile_n) MXU
    logits_ref[...] = logits
    # 2-class softmax column 0 == sigmoid(l0 - l1): no cross-lane reductions,
    # exp + approx reciprocal both run on the otherwise-idle EUP slot.
    diff = logits[0:1, :] - logits[1:2, :]                     # (1, tile_n)
    probs_ref[...] = pl.reciprocal(1.0 + jnp.exp(-diff), approx=True)


def similarity_pallas(image_features_t, text_scaled):
    """image_features_t: (D, N) f32 (lane-dense); text_scaled: (K, D) f32.

    Returns (logits (N, K), probs_of_class0 (N,)) from ONE pallas_call.
    """
    D, N = image_features_t.shape
    K = text_scaled.shape[0]
    assert K == 2, "sigmoid rewrite of the 2-class softmax requires K == 2"

    if N <= LANE:
        tile_n = N                                  # full-extent single block
    else:
        # >=2 lane-aligned blocks so ("parallel",) can shard across v7x TCs.
        tile_n = min(MAX_TILE_N, _round_up(pl.cdiv(N, 2), LANE))
    grid = (pl.cdiv(N, tile_n),)                    # ragged last block is masked

    logits_t, probs = pl.pallas_call(
        _sim_kernel,
        out_shape=(jax.ShapeDtypeStruct((K, N), jnp.float32),
                   jax.ShapeDtypeStruct((1, N), jnp.float32)),
        grid=grid,
        in_specs=[
            pl.BlockSpec((K, D), lambda i: (0, 0)),        # tiny, resident
            pl.BlockSpec((D, tile_n), lambda i: (0, i)),   # packed, no pad
        ],
        out_specs=(
            pl.BlockSpec((K, tile_n), lambda i: (0, i)),
            pl.BlockSpec((1, tile_n), lambda i: (0, i)),
        ),
        compiler_params=pltpu.CompilerParams(
            dimension_semantics=("parallel",)),
    )(text_scaled, image_features_t)

    return logits_t.T, probs[0]                     # (N, K), (N,) — layout plumbing


# ===================== CLIP-style text encoder (plain JAX glue) ==============
def layer_norm(x, w, b, eps=1e-5):
    mu = jnp.mean(x, axis=-1, keepdims=True)
    var = jnp.mean((x - mu) ** 2, axis=-1, keepdims=True)
    return (x - mu) * jax.lax.rsqrt(var + eps) * w + b


def quick_gelu(x):
    return x * jax.nn.sigmoid(1.702 * x)


def mha(x, p, mask):
    # x: (L, N, W) seq-first, like nn.MultiheadAttention default
    L, N, W = x.shape
    H = NUM_HEADS
    hd = W // H
    qkv = x @ p["in_proj_w"].T + p["in_proj_b"]          # (L, N, 3W)
    q, k, v = jnp.split(qkv, 3, axis=-1)

    def to_heads(t):
        return t.reshape(L, N, H, hd).transpose(1, 2, 0, 3)   # (N, H, L, hd)

    q, k, v = to_heads(q), to_heads(k), to_heads(v)
    scores = (q @ jnp.swapaxes(k, -1, -2)) / math.sqrt(hd) + mask   # (N,H,L,L)
    attn = jax.nn.softmax(scores, axis=-1)
    out = attn @ v                                              # (N, H, L, hd)
    out = out.transpose(2, 0, 1, 3).reshape(L, N, W)
    return out @ p["out_proj_w"].T + p["out_proj_b"]


def residual_block(x, p, mask):
    x = x + mha(layer_norm(x, p["ln1_w"], p["ln1_b"]), p, mask)
    h = layer_norm(x, p["ln2_w"], p["ln2_b"])
    h = quick_gelu(h @ p["fc_w"].T + p["fc_b"]) @ p["proj_w"].T + p["proj_b"]
    return x + h


def text_encoder(prompts, tokenized_prompts, params):
    # prompts: (K, L, W) learned prompt embeddings
    x = prompts + params["positional_embedding"]          # (K, L, W)
    x = jnp.transpose(x, (1, 0, 2))                       # (L, K, W)
    L = x.shape[0]
    mask = jnp.triu(jnp.full((L, L), -1e9, jnp.float32), k=1)  # causal (CLIP)
    for blk in params["blocks"]:
        x = residual_block(x, blk, mask)
    x = jnp.transpose(x, (1, 0, 2))                       # (K, L, W)
    x = layer_norm(x, params["lnf_w"], params["lnf_b"])
    eot = jnp.argmax(tokenized_prompts, axis=-1)          # (1,), broadcasts
    idx = jnp.broadcast_to(eot, (x.shape[0],))
    x = x[jnp.arange(x.shape[0]), idx]                    # (K, W)
    return x @ params["text_projection"]                  # (K, D)


# ============================= parameter setup ===============================
def init_params(key):
    def nrm(k, shape, std=0.02):
        return std * jax.random.normal(k, shape, jnp.float32)

    keys = iter(jax.random.split(key, 64))
    params = {
        "positional_embedding": nrm(next(keys), (CONTEXT_LEN, WIDTH), 0.01),
        "lnf_w": jnp.ones((WIDTH,), jnp.float32),
        "lnf_b": jnp.zeros((WIDTH,), jnp.float32),
        "text_projection": nrm(next(keys), (WIDTH, EMBED_DIM),
                               WIDTH ** -0.5),
        "blocks": [],
    }
    for _ in range(NUM_LAYERS):
        params["blocks"].append({
            "ln1_w": jnp.ones((WIDTH,), jnp.float32),
            "ln1_b": jnp.zeros((WIDTH,), jnp.float32),
            "ln2_w": jnp.ones((WIDTH,), jnp.float32),
            "ln2_b": jnp.zeros((WIDTH,), jnp.float32),
            "in_proj_w": nrm(next(keys), (3 * WIDTH, WIDTH), WIDTH ** -0.5),
            "in_proj_b": jnp.zeros((3 * WIDTH,), jnp.float32),
            "out_proj_w": nrm(next(keys), (WIDTH, WIDTH), WIDTH ** -0.5),
            "out_proj_b": jnp.zeros((WIDTH,), jnp.float32),
            "fc_w": nrm(next(keys), (4 * WIDTH, WIDTH), (2 * WIDTH) ** -0.5),
            "fc_b": jnp.zeros((4 * WIDTH,), jnp.float32),
            "proj_w": nrm(next(keys), (WIDTH, 4 * WIDTH), WIDTH ** -0.5),
            "proj_b": jnp.zeros((WIDTH,), jnp.float32),
        })
    # xavier_normal_ embedding_prompt, shape (K, L, W)
    std = math.sqrt(2.0 / (CONTEXT_LEN + WIDTH))
    params["embedding_prompt"] = std * jax.random.normal(
        next(keys), (NUM_PROMPTS, CONTEXT_LEN, WIDTH), jnp.float32)
    return params


def make_tokenized_prompts():
    # Synthetic clip.tokenize(" ".join(["X"] * LENGTH_PROMPT)):
    # [SOT, X*LENGTH_PROMPT, EOT, 0...]; EOT (49407) is the argmax position.
    toks = jnp.zeros((1, CONTEXT_LEN), jnp.int32)
    toks = toks.at[0, 0].set(49406)                         # SOT
    toks = toks.at[0, 1:1 + LENGTH_PROMPT].set(343)         # "X" token id
    toks = toks.at[0, 1 + LENGTH_PROMPT].set(49407)         # EOT (argmax)
    return toks


def compute_text_features(params):
    tokenized_prompts = make_tokenized_prompts()
    return text_encoder(params["embedding_prompt"],
                        tokenized_prompts, params)           # (K, D)


# ============================== Prompts.forward ==============================
def _scale_text(text_features):
    # Hoisted out of the kernel: fold the 100.0 logit scale into the
    # normalization — one rsqrt on a (K, D)=(2, 32) tensor.
    txt = text_features.astype(jnp.float32)
    return txt * (100.0 * jax.lax.rsqrt(
        jnp.sum(txt * txt, axis=-1, keepdims=True)))


def prompts_forward_both(tensor, params, text_features=None):
    """Fused path: one pallas_call returns (logits (N, K), probs0 (N,))."""
    if text_features is None:
        text_features = compute_text_features(params)        # (K, D)
    text_scaled = _scale_text(text_features)

    B, M, D = tensor.shape
    # PyTorch loop computes per-batch similarities then cats along dim 0;
    # flattening the batch dim is equivalent.  Transpose once so the kernel
    # sees a lane-dense (D, N) image slab.
    image_features_t = tensor.reshape(B * M, D).astype(jnp.float32).T
    return similarity_pallas(image_features_t, text_scaled)


def prompts_forward(tensor, params, flag=1, text_features=None):
    # flag is a static Python int (trace-time specialization), matching the
    # PyTorch `if flag == 0:` control flow.
    logits, probs0 = prompts_forward_both(tensor, params, text_features)
    return logits if flag == 0 else probs0


# ==================================== main ===================================
if __name__ == "__main__":
    key = jax.random.PRNGKey(0)
    k_params, k_img = jax.random.split(key)
    params = init_params(k_params)

    tensor = jax.random.normal(k_img, (BATCH, M_PER, EMBED_DIM), jnp.float32)

    # text encoder runs once; its result is reused for both flag semantics.
    text_features = compute_text_features(params)

    # single fused pallas_call produces both the flag=0 and flag=1 results.
    logits, probs = prompts_forward_both(tensor, params,
                                         text_features=text_features)
    jax.block_until_ready((logits, probs))

    # sanity: shapes match PyTorch semantics
    assert logits.shape == (BATCH * M_PER, NUM_PROMPTS)
    assert probs.shape == (BATCH * M_PER,)

    # cross-check the Pallas hot path against a pure-JAX reference
    tf_n = text_features / jnp.linalg.norm(text_features, axis=-1, keepdims=True)
    ref_logits = 100.0 * tensor.reshape(-1, EMBED_DIM) @ tf_n.T
    ref_probs = jax.nn.softmax(ref_logits, axis=-1)[:, 0]
    assert jnp.allclose(logits, ref_logits, atol=1e-3, rtol=1e-3)
    assert jnp.allclose(probs, ref_probs, atol=1e-3, rtol=1e-3)

    print("KERNEL_OK")
</pallas_src>

<mosaic_0001>
module attributes {stable_mosaic.version = 11 : i64} {
  func.func @_sim_kernel(%arg0: i32, %arg1: memref<2x32xf32, #tpu.memory_space<vmem>>, %arg2: memref<32x16xf32, #tpu.memory_space<vmem>>, %arg3: memref<2x16xf32, #tpu.memory_space<vmem>>, %arg4: memref<1x16xf32, #tpu.memory_space<vmem>>) attributes {dimension_semantics = [#tpu.dimension_semantics<parallel>], iteration_bounds = array<i64: 1>, scalar_prefetch = 0 : i64, scratch_operands = 0 : i64, tpu.core_type = #tpu.core_type<tc>, window_params = [{pipeline_mode = #tpu.pipeline_mode<synchronous>, transform_indices = @transform_0, window_bounds = array<i64: 2, 32>}, {transform_indices = @transform_1, window_bounds = array<i64: 32, 16>}, {transform_indices = @transform_2, window_bounds = array<i64: 2, 16>}, {transform_indices = @transform_3, window_bounds = array<i64: 1, 16>}]} {
    %c0 = arith.constant 0 : index
    %c0_0 = arith.constant 0 : index
    %0 = vector.load %arg1[%c0, %c0_0] : memref<2x32xf32, #tpu.memory_space<vmem>>, vector<2x32xf32>
    %c0_1 = arith.constant 0 : index
    %c0_2 = arith.constant 0 : index
    %1 = vector.load %arg2[%c0_1, %c0_2] : memref<32x16xf32, #tpu.memory_space<vmem>>, vector<32x16xf32>
    %cst = arith.constant dense<0.000000e+00> : vector<2x16xf32>
    %2 = tpu.matmul %0, %1, %cst {dimension_numbers = #tpu.dot_dimension_numbers<[1], [0], [0], [1], [0, 0, 1, 1], [], []>} : vector<2x32xf32>, vector<32x16xf32>, vector<2x16xf32> -> vector<2x16xf32>
    %c0_3 = arith.constant 0 : index
    %c0_4 = arith.constant 0 : index
    %3 = vector.load %arg3[%c0_3, %c0_4] : memref<2x16xf32, #tpu.memory_space<vmem>>, vector<2x16xf32>
    tpu.vector_store %arg3[%c0_3, %c0_4], %2 {strides = array<i32>} : memref<2x16xf32, #tpu.memory_space<vmem>>, vector<2x16xf32>,
    %4 = vector.extract_strided_slice %2 {offsets = [0, 0], sizes = [1, 16], strides = [1, 1]} : vector<2x16xf32> to vector<1x16xf32>
    %5 = vector.extract_strided_slice %2 {offsets = [1, 0], sizes = [1, 16], strides = [1, 1]} : vector<2x16xf32> to vector<1x16xf32>
    %6 = arith.subf %4, %5 : vector<1x16xf32>
    %cst_5 = arith.constant 0.000000e+00 : f32
    %7 = vector.broadcast %cst_5 : f32 to vector<1x16xf32>
    %8 = arith.subf %7, %6 : vector<1x16xf32>
    %9 = math.exp %8 : vector<1x16xf32>
    %cst_6 = arith.constant 1.000000e+00 : f32
    %10 = vector.broadcast %cst_6 : f32 to vector<1x16xf32>
    %11 = arith.addf %10, %9 : vector<1x16xf32>
    %12 = tpu.reciprocal %11 {approx = true} : vector<1x16xf32> -> vector<1x16xf32>
    %c0_7 = arith.constant 0 : index
    %c0_8 = arith.constant 0 : index
    %13 = vector.load %arg4[%c0_7, %c0_8] : memref<1x16xf32, #tpu.memory_space<vmem>>, vector<1x16xf32>
    tpu.vector_store %arg4[%c0_7, %c0_8], %12 {strides = array<i32>} : memref<1x16xf32, #tpu.memory_space<vmem>>, vector<1x16xf32>,
    return
  }
  func.func @transform_0(%arg0: i32) -> (i32, i32) {
    %c0_i32 = arith.constant 0 : i32
    %c0_i32_0 = arith.constant 0 : i32
    %c0_i32_1 = arith.constant 0 : i32
    return %c0_i32, %c0_i32_0 : i32, i32
  }
  func.func @transform_1(%arg0: i32) -> (i32, i32) {
    %c0_i32 = arith.constant 0 : i32
    %c0_i32_0 = arith.constant 0 : i32
    return %c0_i32, %arg0 : i32, i32
  }
  func.func @transform_2(%arg0: i32) -> (i32, i32) {
    %c0_i32 = arith.constant 0 : i32
    %c0_i32_0 = arith.constant 0 : i32
    return %c0_i32, %arg0 : i32, i32
  }
  func.func @transform_3(%arg0: i32) -> (i32, i32) {
    %c0_i32 = arith.constant 0 : i32
    %c0_i32_0 = arith.constant 0 : i32
    return %c0_i32, %arg0 : i32, i32
  }
}

</mosaic_0001>

<llo_original>
// kernel: tpu_custom_call.1
$region0: #{tpu_custom_call.1}
  #allocation0 [shape = 'u32[]', space=smem, size = 0x4, offset = 0x4, fixed_abs, tag = 'smem constant byte address 0x4 - core index']
  #allocation1 [shape = 'u32[144,128]{1,0:T(1,128)}', space=vmem, size = 0x12000, scoped, tag = 'internal scratch']
  %s0 = inlined_call_operand.vmem [shape: f32[2,32], index: 0, kind: input, shape index: {}]
  %s1 = inlined_call_operand.vmem [shape: f32[32,16], index: 1, kind: input, shape index: {}]
  %s2 = inlined_call_operand.hbm [shape: f32[2,16], index: 2, kind: output, shape index: {0}]
  %s3 = inlined_call_operand.hbm [shape: f32[1,16], index: 3, kind: output, shape index: {1}]
  %4 = xla_tuple %s2, %s3
  %s5 = sld [smem:[#allocation0]]
  $region26: #{tpu_custom_call.1} parent=0
    _
  %s7 = ssub.s32 1, %s5
  %s8 = scalar_select 0, %s7, %s5
  $region1: #{tpu_custom_call.1} parent=0
    #allocation2 [shape = 'u8[1024]{0}', space=vmem, size = 0x400, scoped, tag = 'output window, operand 0, single buffered']
    #allocation3 [shape = 's32[1]{0}', space=sflag, size = 0x4, scoped, tag = 'scoped memory for tpu_custom_call.1']
    #allocation4 [shape = 'u8[512]{0}', space=vmem, size = 0x400, scoped, tag = 'output window, operand 1, single buffered']
    #allocation5 [shape = 's32[1]{0}', space=sflag, size = 0x4, scoped, tag = 'scoped memory for tpu_custom_call.1']
    %9 = vsyncpa [#allocation3], 0
    %10 = vsyncpa [#allocation5], 0
    // Predicated region
    $region2: #{tpu_custom_call.1} parent=1 // pred_check
      _
    $region3: #{tpu_custom_call.1} parent=1 // pred_check_branch
      %12 = sbr.rel (0) target = $region5
    $region4: #{tpu_custom_call.1} parent=1 // pred_region
      _
    $region5: #{tpu_custom_call.1} parent=1 // pred_fallthru
      _
    // Predicated region
    $region6: #{tpu_custom_call.1} parent=1 // pred_check
      _
    $region7: #{tpu_custom_call.1} parent=1 // pred_check_branch
      %14 = sbr.rel (0) target = $region9
    $region8: #{tpu_custom_call.1} parent=1 // pred_region
      _
    $region9: #{tpu_custom_call.1} parent=1 // pred_fallthru
      _
    %v15 = vld [vmem:[%s0] sm:$0x3]
    %v16 = vld [vmem:[%s1] sm:$0xff]
    %v17 = vld [vmem:[%s1 + $0x8] sm:$0xff]
    %v18 = vld [vmem:[%s1 + $0x10] sm:$0xff]
    %v19 = vld [vmem:[%s1 + $0x18] sm:$0xff]
    %vm20 = vcmask 261120
    %v22 = vsel %vm20, %v15, 0
    %24 = vmatprep.subr.mxu0 0.0
    %25 = vmatpush1.msra.mxu0 %v16
    %26 = vmatprep.subr.mxu0 0.0
    %27 = vmatpush1.msra.mxu0 %v17
    %28 = vmatprep.subr.mxu0 0.0
    %29 = vmatpush1.msra.mxu0 %v18
    %30 = vmatprep.subr.mxu0 0.0
    %31 = vmatpush1.msra.mxu0 %v19
    %32 = vmatprep.subr.mxu0 0.0
    %33 = vmatpush1.msra.mxu0 0.0
    %34 = vmatprep.subr.mxu0 0.0
    %35 = vmatpush1.msra.mxu0 0.0
    %36 = vmatprep.subr.mxu0 0.0
    %37 = vmatpush1.msra.mxu0 0.0
    %38 = vmatprep.subr.mxu0 0.0
    %39 = vmatpush1.msra.mxu0 0.0
    %40 = vmatprep.subr.mxu0 0.0
    %41 = vmatpush1.msra.mxu0 0.0
    %42 = vmatprep.subr.mxu0 0.0
    %43 = vmatpush1.msra.mxu0 0.0
    %44 = vmatprep.subr.mxu0 0.0
    %45 = vmatpush1.msra.mxu0 0.0
    %46 = vmatprep.subr.mxu0 0.0
    %47 = vmatpush1.msra.mxu0 0.0
    %48 = vmatprep.subr.mxu0 0.0
    %49 = vmatpush1.msra.mxu0 0.0
    %50 = vmatprep.subr.mxu0 0.0
    %51 = vmatpush1.msra.mxu0 0.0
    %52 = vmatprep.subr.mxu0 0.0
    %53 = vmatpush1.msra.mxu0 0.0
    %54 = vmatprep.subr.mxu0 0.0
    %55 = vmatpush1.msra.mxu0 0.0
    %56 = vmatprep.subr.mxu0 0.0
    %57 = vmatpush1.msra.mxu0 0.0
    %58 = vmatprep.subr.mxu0 0.0
    %59 = vmatpush1.msra.mxu0 0.0
    %60 = vmatprep.subr.mxu0 0.0
    %61 = vmatpush1.msra.mxu0 0.0
    %62 = vmatprep.subr.mxu0 0.0
    %63 = vmatpush1.msra.mxu0 0.0
    %64 = vmatprep.subr.mxu0 0.0
    %65 = vmatpush1.msra.mxu0 0.0
    %66 = vmatprep.subr.mxu0 0.0
    %67 = vmatpush1.msra.mxu0 0.0
    %68 = vmatprep.subr.mxu0 0.0
    %69 = vmatpush1.msra.mxu0 0.0
    %70 = vmatprep.subr.mxu0 0.0
    %71 = vmatpush1.msra.mxu0 0.0
    %72 = vmatprep.subr.mxu0 0.0
    %73 = vmatpush1.msra.mxu0 0.0
    %74 = vmatprep.subr.mxu0 0.0
    %75 = vmatpush1.msra.mxu0 0.0
    %76 = vmatprep.subr.mxu0 0.0
    %77 = vmatpush1.msra.mxu0 0.0
    %78 = vmatprep.subr.mxu0 0.0
    %79 = vmatpush1.msra.mxu0 0.0
    %80 = vmatprep.subr.mxu0 0.0
    %81 = vmatpush1.msra.mxu0 0.0
    %82 = vmatprep.subr.mxu0 0.0
    %83 = vmatpush1.msra.mxu0 0.0
    %84 = vmatprep.subr.mxu0 0.0
    %85 = vmatpush1.msra.mxu0 0.0
    %86 = vmatprep.subr.mxu0 0.0
    %87 = vmatpush1.msra.mxu0 0.0
    %88 = vmatprep.mubr.f32.mxu0 0.0
    %89 = vmatmul.mubr.f32.gmra.mrb[0].mxu0 %v22
    %v90 = vpop.f32.mrb[0].mxu0
    %v91 = vadd.f32 0.0, %v90
    %v92 = vpop.f32.mrb[0].mxu0
    %93 = vdwg.mxu0
    %vm94 = vcmask 123904
    %95 = vst.msk [vmem:[#allocation2] sm:$0x3] %vm94, %v91
    %v97 = vrot.slane %v91, 1
    %v99 = vsub.f32 %v91, %v97
    %v100 = vsub.f32 0.0, %v99
    %v101 = vmul.f32 %v100, 1.442695
    %v102 = vpow.pop %v101
    %v103 = vadd.f32 %v102, 1.0
    %v104 = vrcp.pop %v103
    %vm105 = vcmask 122880
    %106 = vst.msk [vmem:[#allocation4] sm:$0x1] %vm105, %v104
    // Predicated region
    $region10: #{tpu_custom_call.1} parent=1 // pred_check
      _
    $region11: #{tpu_custom_call.1} parent=1 // pred_check_branch
      %108 = sbr.rel (0) target = $region13
    $region12: #{tpu_custom_call.1} parent=1 // pred_region
      %s110 = ssub.s32 32, 32
      %111 = vsyncadd [#allocation3], %s110
      %s113 = sshll.u32 [#allocation2], 4
      %s114 = int_to_ptr.vmem [resolvable:$true] %s113
      %116 = dma.vmem_to_hbm [thread:$0]  %s114, 32, %s2, [#allocation3]
    $region13: #{tpu_custom_call.1} parent=1 // pred_fallthru
      _
    // Predicated region
    $region14: #{tpu_custom_call.1} parent=1 // pred_check
      _
    $region15: #{tpu_custom_call.1} parent=1 // pred_check_branch
      %118 = sbr.rel (0) target = $region17
    $region16: #{tpu_custom_call.1} parent=1 // pred_region
      %s120 = ssub.s32 16, 16
      %121 = vsyncadd [#allocation5], %s120
      %s123 = sshll.u32 [#allocation4], 4
      %s124 = int_to_ptr.vmem [resolvable:$true] %s123
      %126 = dma.vmem_to_hbm [thread:$0]  %s124, 16, %s3, [#allocation5]
    $region17: #{tpu_custom_call.1} parent=1 // pred_fallthru
      _
    // Predicated region
    $region18: #{tpu_custom_call.1} parent=1 // pred_check
      _
    $region19: #{tpu_custom_call.1} parent=1 // pred_check_branch
      %128 = sbr.rel (0) target = $region21
    $region20: #{tpu_custom_call.1} parent=1 // pred_region
      %129 = dma.done [#allocation3], 32
    $region21: #{tpu_custom_call.1} parent=1 // pred_fallthru
      _
    // Predicated region
    $region22: #{tpu_custom_call.1} parent=1 // pred_check
      _
    $region23: #{tpu_custom_call.1} parent=1 // pred_check_branch
      %131 = sbr.rel (0) target = $region25
    $region24: #{tpu_custom_call.1} parent=1 // pred_region
      %132 = dma.done [#allocation5], 16
    $region25: #{tpu_custom_call.1} parent=1 // pred_fallthru
      _
    %133 = vsyncpa [#allocation3], 1
    %134 = vsyncpa [#allocation5], 1

</llo_original>
